<compile_context>
chip_gen: v7x
topology: tpu7x:2x2x1
jax: 0.10.0
libtpu: 0.0.40
codegen_flags: <defaults>
</compile_context>

<pallas_src>
from typing import Callable, Dict, List, Sequence

import jax
import jax.numpy as jnp
from jax.experimental import pallas as pl
from jax.experimental.pallas import tpu as pltpu


_LANE = 128  # last-dim blocks: multiples of the 128-wide lanes (or full dim)


def _round_up(x: int, m: int) -> int:
    return ((x + m - 1) // m) * m


def _cdiv(a: int, b: int) -> int:
    return -(-a // b)


def _sublane_multiple(dtype) -> int:
    # native sublane packing: 8 for 32-bit, 16 for bf16, 32 for int8/fp8
    return max(8, 32 // jnp.dtype(dtype).itemsize)


def _vmem_capacity_bytes() -> int:
    try:
        return int(pltpu.get_tpu_info().vmem_capacity_bytes)
    except Exception:
        return 64 * 1024 * 1024  # conservative: v7x per-TensorCore VMEM


# ---------------------------------------------------------------------------
# Pallas kernel: y_tile = x_tile @ Wt_tile + b_tile   (Wt already (in, out))
# ---------------------------------------------------------------------------
def _linear_kernel(x_ref, w_ref, b_ref, o_ref):
    # x_ref: (TM, D_IN)   VMEM, pipelined over row tiles
    # w_ref: (D_IN, TN)   VMEM, resident across the inner (row) grid axis
    # b_ref: (1, TN)      VMEM, resident
    # o_ref: (TM, TN)     VMEM
    acc = jnp.dot(x_ref[...], w_ref[...], preferred_element_type=jnp.float32)
    o_ref[...] = (acc + b_ref[...]).astype(o_ref.dtype)


def _pallas_linear(x: jax.Array, w_t: jax.Array, b2d: jax.Array, d_out: int,
                   *, block_m: int | None = None) -> jax.Array:
    """y = x @ w_t + b2d, slicing back to d_out logical output features.

    w_t: (d_in, d_out_p) pre-transposed, OUT padded to a multiple of 128.
    b2d: (1, d_out_p).
    """
    n, d_in = x.shape
    d_in_w, d_out_p = w_t.shape
    assert d_in == d_in_w, "weight/in_features mismatch"

    dtype = x.dtype
    itemsize = jnp.dtype(dtype).itemsize
    sub = _sublane_multiple(dtype)
    vmem_cap = _vmem_capacity_bytes()

    # Larger row tiles on 128 MiB-VMEM parts (v5e/v6e); 512 on v7x (64 MiB).
    if block_m is None:
        block_m = 1024 if vmem_cap >= (100 << 20) else 512

    # Row tile: aim for >=2 grid steps (v7x megacore sharding), no over-padding.
    if n <= sub:
        tm = n  # full-dim block is always legal
    else:
        tm = min(block_m, _round_up(_cdiv(n, 2), sub))
    num_row_tiles = _cdiv(n, tm)

    # OUT tile: keep the (double-buffered) weight block within ~30% of VMEM.
    w_budget = int(0.30 * vmem_cap)
    if 2 * d_in * d_out_p * itemsize <= w_budget:
        tn = d_out_p
    else:
        tn = max(_LANE, (w_budget // (2 * d_in * itemsize) // _LANE) * _LANE)
        if tn >= 256:
            tn = (tn // 256) * 256  # 256-aligned tiles for v6e/v7x MXU
        tn = min(tn, d_out_p)
    num_out_tiles = _cdiv(d_out_p, tn)

    # Right-sized scoped-VMEM request (double-buffered x/W/b/y + f32 acc),
    # capped at 75% of physical per-core VMEM.
    footprint = (2 * tm * d_in + 2 * d_in * tn + 2 * tn + 2 * tm * tn) * itemsize \
        + tm * tn * 4
    vmem_limit = min(max(footprint + (4 << 20), 16 << 20), int(0.75 * vmem_cap))

    cost = pl.CostEstimate(
        flops=2 * n * d_in * d_out_p,
        transcendentals=0,
        bytes_accessed=(n * d_in * num_out_tiles   # x read (once per OUT tile)
                        + d_in * d_out_p           # weight read (once)
                        + d_out_p                  # bias read
                        + n * d_out_p              # y write
                        ) * itemsize,
    )

    out = pl.pallas_call(
        _linear_kernel,
        out_shape=jax.ShapeDtypeStruct((n, d_out_p), dtype),
        # OUT tiles outer -> the weight tile changes only on the outer axis and
        # stays resident while the row axis sweeps.
        grid=(num_out_tiles, num_row_tiles),
        in_specs=[
            pl.BlockSpec((tm, d_in), lambda j, i: (i, 0)),   # x: tiled over rows
            pl.BlockSpec((d_in, tn), lambda j, i: (0, j)),   # W^T: tiled over OUT
            pl.BlockSpec((1, tn), lambda j, i: (0, j)),      # bias: tiled over OUT
        ],
        out_specs=pl.BlockSpec((tm, tn), lambda j, i: (i, j)),
        compiler_params=pltpu.CompilerParams(
            dimension_semantics=("parallel", "parallel"),    # fully independent
            vmem_limit_bytes=vmem_limit,
        ),
        cost_estimate=cost,
    )(x, w_t, b2d)

    if d_out_p != d_out:
        out = out[:, :d_out]
    return out


# ---------------------------------------------------------------------------
# The wrapped Dict[str, Array] -> Dict[str, Array] "model"
# ---------------------------------------------------------------------------
class LinearHeadModel:
    """Minimal dict-in/dict-out model: {"x": x} -> {"x": x, "y": x @ W^T + b}."""

    def __init__(self, weight: jax.Array, bias: jax.Array):
        # weight: (out_features, in_features) PyTorch layout; bias: (out_features,)
        d_out, d_in = weight.shape
        assert bias.shape == (d_out,)
        d_out_p = _round_up(d_out, _LANE)
        self.d_out = d_out
        # One-time layout work (not repeated per forward call):
        #   transpose to (in, out) so the kernel uses a plain NN contraction,
        #   pad OUT lane-dense so output stores are unmasked full-lane vst.
        w_t = jnp.transpose(weight)
        if d_out_p != d_out:
            w_t = jnp.pad(w_t, ((0, 0), (0, d_out_p - d_out)))
            bias = jnp.pad(bias, (0, d_out_p - d_out))
        self.w_t = w_t                       # (d_in, d_out_p)
        self.b2d = bias.reshape(1, d_out_p)  # (1, d_out_p)

    def __call__(self, data: Dict[str, jax.Array]) -> Dict[str, jax.Array]:
        x = data["x"]
        out = dict(data)
        out["y"] = _pallas_linear(x, self.w_t, self.b2d, self.d_out)
        return out


# ---------------------------------------------------------------------------
# Wrapper logic (functional equivalent of ListInputOutputWrapper)
# ---------------------------------------------------------------------------
def _list_to_dict(keys: Sequence[str], args: Sequence[jax.Array]) -> Dict[str, jax.Array]:
    return {key: arg for key, arg in zip(keys, args)}


def _list_from_dict(keys: Sequence[str], data: Dict[str, jax.Array]) -> List[jax.Array]:
    return [data[key] for key in keys]


class ListInputOutputWrapper:
    """Positional tensors in -> list of tensors out, around a dict-dict model."""

    def __init__(self, model: Callable[[Dict[str, jax.Array]], Dict[str, jax.Array]],
                 input_keys: Sequence[str], output_keys: Sequence[str]):
        self.model = model
        self.input_keys = list(input_keys)
        self.output_keys = list(output_keys)

    def __call__(self, *args: jax.Array) -> List[jax.Array]:
        inputs = _list_to_dict(self.input_keys, args)
        outputs = self.model(inputs)
        return _list_from_dict(self.output_keys, outputs)


# ---------------------------------------------------------------------------
# Demo
# ---------------------------------------------------------------------------
if __name__ == "__main__":
    N, D_IN, D_OUT = 8, 32, 32

    key = jax.random.PRNGKey(0)
    kx, kw, kb = jax.random.split(key, 3)

    x = jax.random.normal(kx, (N, D_IN), dtype=jnp.float32)
    weight = jax.random.normal(kw, (D_OUT, D_IN), dtype=jnp.float32) * 0.1
    bias = jax.random.normal(kb, (D_OUT,), dtype=jnp.float32) * 0.01

    model = LinearHeadModel(weight, bias)
    wrapper = ListInputOutputWrapper(model, input_keys=["x"], output_keys=["y"])

    # forward(*input_tensors) -> [y]
    (y,) = wrapper(x)
    y = jax.block_until_ready(y)

    # Reference check against plain JAX.
    y_ref = x @ weight.T + bias
    assert y.shape == (N, D_OUT)
    assert jnp.allclose(y, y_ref, atol=1e-5, rtol=1e-5)

    print("KERNEL_OK")
</pallas_src>

<mosaic_0001>
module attributes {stable_mosaic.version = 11 : i64} {
  func.func @_linear_kernel(%arg0: i32, %arg1: i32, %arg2: memref<8x32xf32, #tpu.memory_space<vmem>>, %arg3: memref<32x128xf32, #tpu.memory_space<vmem>>, %arg4: memref<1x128xf32, #tpu.memory_space<vmem>>, %arg5: memref<8x128xf32, #tpu.memory_space<vmem>>) attributes {dimension_semantics = [#tpu.dimension_semantics<parallel>, #tpu.dimension_semantics<parallel>], iteration_bounds = array<i64: 1, 1>, scalar_prefetch = 0 : i64, scratch_operands = 0 : i64, tpu.core_type = #tpu.core_type<tc>, window_params = [{transform_indices = @transform_0, window_bounds = array<i64: 8, 32>}, {transform_indices = @transform_1, window_bounds = array<i64: 32, 128>}, {transform_indices = @transform_2, window_bounds = array<i64: 1, 128>}, {transform_indices = @transform_3, window_bounds = array<i64: 8, 128>}]} {
    %c0 = arith.constant 0 : index
    %c0_0 = arith.constant 0 : index
    %0 = vector.load %arg2[%c0, %c0_0] : memref<8x32xf32, #tpu.memory_space<vmem>>, vector<8x32xf32>
    %c0_1 = arith.constant 0 : index
    %c0_2 = arith.constant 0 : index
    %1 = vector.load %arg3[%c0_1, %c0_2] : memref<32x128xf32, #tpu.memory_space<vmem>>, vector<32x128xf32>
    %cst = arith.constant dense<0.000000e+00> : vector<8x128xf32>
    %2 = tpu.matmul %0, %1, %cst {dimension_numbers = #tpu.dot_dimension_numbers<[1], [0], [0], [1], [0, 0, 1, 1], [], []>} : vector<8x32xf32>, vector<32x128xf32>, vector<8x128xf32> -> vector<8x128xf32>
    %c0_3 = arith.constant 0 : index
    %c0_4 = arith.constant 0 : index
    %3 = vector.load %arg4[%c0_3, %c0_4] : memref<1x128xf32, #tpu.memory_space<vmem>>, vector<1x128xf32>
    %4 = vector.broadcast %3 : vector<1x128xf32> to vector<8x128xf32>
    %5 = arith.addf %2, %4 : vector<8x128xf32>
    %c0_5 = arith.constant 0 : index
    %c0_6 = arith.constant 0 : index
    %6 = vector.load %arg5[%c0_5, %c0_6] : memref<8x128xf32, #tpu.memory_space<vmem>>, vector<8x128xf32>
    tpu.vector_store %arg5[%c0_5, %c0_6], %5 {strides = array<i32>} : memref<8x128xf32, #tpu.memory_space<vmem>>, vector<8x128xf32>,
    return
  }
  func.func @transform_0(%arg0: i32, %arg1: i32) -> (i32, i32) {
    %c0_i32 = arith.constant 0 : i32
    %c0_i32_0 = arith.constant 0 : i32
    return %arg1, %c0_i32 : i32, i32
  }
  func.func @transform_1(%arg0: i32, %arg1: i32) -> (i32, i32) {
    %c0_i32 = arith.constant 0 : i32
    %c0_i32_0 = arith.constant 0 : i32
    return %c0_i32, %arg0 : i32, i32
  }
  func.func @transform_2(%arg0: i32, %arg1: i32) -> (i32, i32) {
    %c0_i32 = arith.constant 0 : i32
    %c0_i32_0 = arith.constant 0 : i32
    return %c0_i32, %arg0 : i32, i32
  }
  func.func @transform_3(%arg0: i32, %arg1: i32) -> (i32, i32) {
    %c0_i32 = arith.constant 0 : i32
    return %arg1, %arg0 : i32, i32
  }
}

</mosaic_0001>

<llo_original>
// kernel: tpu_custom_call.1
$region0: #{tpu_custom_call.1}
  #allocation0 [shape = 'u32[]', space=smem, size = 0x4, offset = 0x4, fixed_abs, tag = 'smem constant byte address 0x4 - core index']
  #allocation1 [shape = 'u32[144,128]{1,0:T(1,128)}', space=vmem, size = 0x12000, scoped, tag = 'internal scratch']
  %s0 = inlined_call_operand.hbm [shape: f32[8,32], index: 0, kind: input, shape index: {}]
  %s1 = inlined_call_operand.hbm [shape: f32[32,128], index: 1, kind: input, shape index: {}]
  %s2 = inlined_call_operand.vmem [shape: f32[1,128], index: 2, kind: input, shape index: {}]
  %s3 = inlined_call_operand.hbm [shape: f32[8,128], index: 3, kind: output, shape index: {}]
  %s4 = sld [smem:[#allocation0]]
  $region30: #{tpu_custom_call.1} parent=0
    _
  %s6 = ssub.s32 1, %s4
  %s7 = scalar_select 0, %s6, %s4
  $region1: #{tpu_custom_call.1} parent=0
    #allocation2 [shape = 'u8[4096]{0}', space=vmem, size = 0x1000, scoped, tag = 'input window, operand 0, single buffered']
    #allocation3 [shape = 's32[1]{0}', space=sflag, size = 0x4, scoped, tag = 'scoped memory for tpu_custom_call.1']
    #allocation4 [shape = 's32[1]{0}', space=sflag, size = 0x4, scoped, tag = 'scoped memory for tpu_custom_call.1']
    #allocation5 [shape = 'u8[16384]{0}', space=vmem, size = 0x4000, scoped, tag = 'input window, operand 1, single buffered']
    #allocation6 [shape = 's32[1]{0}', space=sflag, size = 0x4, scoped, tag = 'scoped memory for tpu_custom_call.1']
    #allocation7 [shape = 'u8[4096]{0}', space=vmem, size = 0x1000, scoped, tag = 'output window, operand 0, single buffered']
    %8 = vsyncpa [#allocation3], 0
    %9 = vsyncpa [#allocation6], 0
    %10 = vsyncpa [#allocation4], 0
    // Predicated region
    $region2: #{tpu_custom_call.1} parent=1 // pred_check
      _
    $region3: #{tpu_custom_call.1} parent=1 // pred_check_branch
      %12 = sbr.rel (0) target = $region5
    $region4: #{tpu_custom_call.1} parent=1 // pred_region
      %s14 = ssub.s32 128, 128
      %15 = vsyncadd [#allocation3], %s14
      %s17 = sshll.u32 [#allocation2], 4
      %s18 = int_to_ptr.vmem [resolvable:$true] %s17
      %20 = dma.hbm_to_vmem [thread:$0]  %s0, 128, %s18, [#allocation3]
    $region5: #{tpu_custom_call.1} parent=1 // pred_fallthru
      _
    // Predicated region
    $region6: #{tpu_custom_call.1} parent=1 // pred_check
      _
    $region7: #{tpu_custom_call.1} parent=1 // pred_check_branch
      %22 = sbr.rel (0) target = $region9
    $region8: #{tpu_custom_call.1} parent=1 // pred_region
      %s24 = ssub.s32 512, 512
      %25 = vsyncadd [#allocation6], %s24
      %s26 = sshll.u32 [#allocation5], 4
      %s27 = int_to_ptr.vmem [resolvable:$true] %s26
      %32 = dma.hbm_to_vmem [thread:$0]  %s1, 512, %s27, [#allocation6], 128, 128, 8
    $region9: #{tpu_custom_call.1} parent=1 // pred_fallthru
      _
    // Predicated region
    $region10: #{tpu_custom_call.1} parent=1 // pred_check
      _
    $region11: #{tpu_custom_call.1} parent=1 // pred_check_branch
      %34 = sbr.rel (0) target = $region13
    $region12: #{tpu_custom_call.1} parent=1 // pred_region
      _
    $region13: #{tpu_custom_call.1} parent=1 // pred_fallthru
      _
    // Predicated region
    $region14: #{tpu_custom_call.1} parent=1 // pred_check
      _
    $region15: #{tpu_custom_call.1} parent=1 // pred_check_branch
      %36 = sbr.rel (0) target = $region17
    $region16: #{tpu_custom_call.1} parent=1 // pred_region
      %37 = dma.done [#allocation3], 128
    $region17: #{tpu_custom_call.1} parent=1 // pred_fallthru
      _
    // Predicated region
    $region18: #{tpu_custom_call.1} parent=1 // pred_check
      _
    $region19: #{tpu_custom_call.1} parent=1 // pred_check_branch
      %39 = sbr.rel (0) target = $region21
    $region20: #{tpu_custom_call.1} parent=1 // pred_region
      %40 = dma.done [#allocation6], 512
    $region21: #{tpu_custom_call.1} parent=1 // pred_fallthru
      _
    %v41 = vld [vmem:[#allocation2] sm:$0xff]
    %v42 = vld [vmem:[#allocation5] sm:$0xff]
    %v43 = vld [vmem:[#allocation5 + $0x8] sm:$0xff]
    %v44 = vld [vmem:[#allocation5 + $0x10] sm:$0xff]
    %v45 = vld [vmem:[#allocation5 + $0x18] sm:$0xff]
    %v46 = vld [vmem:[%s2] sm:$0x1]
    %v48 = vlaneseq
    %v49 = vshrl.u32 %v48, 7
    %v50 = vsub.s32 0, %v49
    %v51 = vrot.slane %v46, %v50
    %vm53 = vcmask 261120
    %v55 = vsel %vm53, %v41, 0
    %57 = vmatprep.subr.mxu0 0.0
    %58 = vmatpush1.msra.mxu0 %v42
    %59 = vmatprep.subr.mxu0 0.0
    %60 = vmatpush1.msra.mxu0 %v43
    %61 = vmatprep.subr.mxu0 0.0
    %62 = vmatpush1.msra.mxu0 %v44
    %63 = vmatprep.subr.mxu0 0.0
    %64 = vmatpush1.msra.mxu0 %v45
    %65 = vmatprep.subr.mxu0 0.0
    %66 = vmatpush1.msra.mxu0 0.0
    %67 = vmatprep.subr.mxu0 0.0
    %68 = vmatpush1.msra.mxu0 0.0
    %69 = vmatprep.subr.mxu0 0.0
    %70 = vmatpush1.msra.mxu0 0.0
    %71 = vmatprep.subr.mxu0 0.0
    %72 = vmatpush1.msra.mxu0 0.0
    %73 = vmatprep.subr.mxu0 0.0
    %74 = vmatpush1.msra.mxu0 0.0
    %75 = vmatprep.subr.mxu0 0.0
    %76 = vmatpush1.msra.mxu0 0.0
    %77 = vmatprep.subr.mxu0 0.0
    %78 = vmatpush1.msra.mxu0 0.0
    %79 = vmatprep.subr.mxu0 0.0
    %80 = vmatpush1.msra.mxu0 0.0
    %81 = vmatprep.subr.mxu0 0.0
    %82 = vmatpush1.msra.mxu0 0.0
    %83 = vmatprep.subr.mxu0 0.0
    %84 = vmatpush1.msra.mxu0 0.0
    %85 = vmatprep.subr.mxu0 0.0
    %86 = vmatpush1.msra.mxu0 0.0
    %87 = vmatprep.subr.mxu0 0.0
    %88 = vmatpush1.msra.mxu0 0.0
    %89 = vmatprep.subr.mxu0 0.0
    %90 = vmatpush1.msra.mxu0 0.0
    %91 = vmatprep.subr.mxu0 0.0
    %92 = vmatpush1.msra.mxu0 0.0
    %93 = vmatprep.subr.mxu0 0.0
    %94 = vmatpush1.msra.mxu0 0.0
    %95 = vmatprep.subr.mxu0 0.0
    %96 = vmatpush1.msra.mxu0 0.0
    %97 = vmatprep.subr.mxu0 0.0
    %98 = vmatpush1.msra.mxu0 0.0
    %99 = vmatprep.subr.mxu0 0.0
    %100 = vmatpush1.msra.mxu0 0.0
    %101 = vmatprep.subr.mxu0 0.0
    %102 = vmatpush1.msra.mxu0 0.0
    %103 = vmatprep.subr.mxu0 0.0
    %104 = vmatpush1.msra.mxu0 0.0
    %105 = vmatprep.subr.mxu0 0.0
    %106 = vmatpush1.msra.mxu0 0.0
    %107 = vmatprep.subr.mxu0 0.0
    %108 = vmatpush1.msra.mxu0 0.0
    %109 = vmatprep.subr.mxu0 0.0
    %110 = vmatpush1.msra.mxu0 0.0
    %111 = vmatprep.subr.mxu0 0.0
    %112 = vmatpush1.msra.mxu0 0.0
    %113 = vmatprep.subr.mxu0 0.0
    %114 = vmatpush1.msra.mxu0 0.0
    %115 = vmatprep.subr.mxu0 0.0
    %116 = vmatpush1.msra.mxu0 0.0
    %117 = vmatprep.subr.mxu0 0.0
    %118 = vmatpush1.msra.mxu0 0.0
    %119 = vmatprep.subr.mxu0 0.0
    %120 = vmatpush1.msra.mxu0 0.0
    %121 = vmatprep.mubr.f32.mxu0 0.0
    %122 = vmatmul.mubr.f32.gmra.mrb[0].mxu0 %v55
    %v123 = vpop.f32.mrb[0].mxu0
    %v124 = vadd.f32 %v51, %v123
    %v125 = vpop.f32.mrb[0].mxu0
    %126 = vdwg.mxu0
    %127 = vst [vmem:[#allocation7] sm:$0xff] %v124
    // Predicated region
    $region22: #{tpu_custom_call.1} parent=1 // pred_check
      _
    $region23: #{tpu_custom_call.1} parent=1 // pred_check_branch
      %129 = sbr.rel (0) target = $region25
    $region24: #{tpu_custom_call.1} parent=1 // pred_region
      %s131 = ssub.s32 128, 128
      %132 = vsyncadd [#allocation4], %s131
      %s134 = sshll.u32 [#allocation7], 4
      %s135 = int_to_ptr.vmem [resolvable:$true] %s134
      %137 = dma.vmem_to_hbm [thread:$0]  %s135, 128, %s3, [#allocation4]
    $region25: #{tpu_custom_call.1} parent=1 // pred_fallthru
      _
    // Predicated region
    $region26: #{tpu_custom_call.1} parent=1 // pred_check
      _
    $region27: #{tpu_custom_call.1} parent=1 // pred_check_branch
      %139 = sbr.rel (0) target = $region29
    $region28: #{tpu_custom_call.1} parent=1 // pred_region
      %140 = dma.done [#allocation4], 128
    $region29: #{tpu_custom_call.1} parent=1 // pred_fallthru
      _
    %141 = vsyncpa [#allocation3], 1
    %142 = vsyncpa [#allocation6], 1
    %143 = vsyncpa [#allocation4], 1

</llo_original>
